<compile_context>
chip_gen: v5e
topology: v5e:2x2
jax: 0.10.0
libtpu: 0.0.40
codegen_flags: <defaults>
</compile_context>

<pallas_src>
import math

import numpy as np
import jax
import jax.numpy as jnp
from jax.experimental import pallas as pl
from jax.experimental.pallas import tpu as pltpu


# ---------------------------------------------------------------------------
# Kernels
# ---------------------------------------------------------------------------

def _rope_fused_kernel(pos_ref, coef_ref, x_ref, o_ref):
    """Fused RoPE block.

    Blocks:
      pos_ref : (tm, pack)    f32   token positions, `pack` tokens per row
      coef_ref: (pack+1, dp)  f32   rows 0..pack-1: sign-baked inv_freq masked
                                    to its token group; row `pack`: parity
                                    (1.0 on even lanes, 0.0 on odd lanes)
      x_ref   : (tm, dp)      x.dtype, dp = pack * d_k (lane-dense)
      o_ref   : (tm, dp)      x.dtype

    The alternating (-1, +1) sign of the interleaved rotation is baked into
    the angle (sin is odd, cos is even), so out = x*cos + swap(x)*sin exactly.
    """
    pack = pos_ref.shape[1]
    x = x_ref[...].astype(jnp.float32)               # (tm, dp)
    last = x.ndim - 1                                 # roll needs axis >= 0
    dp = x.shape[last]

    coef = coef_ref[...]                              # (pack+1, dp)
    pos = pos_ref[...]                                # (tm, pack)

    # angle[r, j] = sign(j) * pos[r, j // d_k] * inv_freq[(j % d_k) // 2]
    angle = pos[:, 0:1] * coef[0:1, :]                # (tm,1)*(1,dp) broadcast
    for p in range(1, pack):
        angle = angle + pos[:, p:p + 1] * coef[p:p + 1, :]
    c = jnp.cos(angle)                                # transcendental path
    s = jnp.sin(angle)                                # sign already baked in

    # Adjacent even/odd pair swap via XLU rotations (no strided slicing).
    # Wrap-around lanes are never used: even lanes take r_bwd, odd take r_fwd.
    r_fwd = pltpu.roll(x, shift=1, axis=last)         # r_fwd[j] = x[j-1]
    r_bwd = pltpu.roll(x, shift=dp - 1, axis=last)    # r_bwd[j] = x[j+1]

    even = coef[pack:pack + 1, :]                     # (1, dp) 1.0 / 0.0
    s_even = s * even                                 # == s on even lanes, exact 0 on odd
    s_odd = s - s_even                                # == s on odd lanes, exact 0 on even
    o_ref[...] = (x * c + r_bwd * s_even + r_fwd * s_odd).astype(o_ref.dtype)


def _rope_tables_kernel(x_ref, cos_ref, sin_ref, o_ref):
    """Fallback: cos / sign-baked sin arrive precomputed (f32)."""
    x = x_ref[...].astype(jnp.float32)
    c = cos_ref[...]
    s = sin_ref[...]
    last = x.ndim - 1
    dp = x.shape[last]
    r_fwd = pltpu.roll(x, shift=1, axis=last)
    r_bwd = pltpu.roll(x, shift=dp - 1, axis=last)
    lane = jax.lax.broadcasted_iota(jnp.int32, x.shape, dimension=last)
    x_swap = jnp.where((lane & 1) == 0, r_bwd, r_fwd)
    o_ref[...] = (x * c + x_swap * s).astype(o_ref.dtype)


# ---------------------------------------------------------------------------
# Small host-side constants
# ---------------------------------------------------------------------------

def _inv_freq_np(theta: float, d_k: int) -> np.ndarray:
    # Matches torch: 1 / theta ** (arange(0, d_k, 2) / d_k).
    exps = np.arange(0, d_k, 2, dtype=np.float64) / float(d_k)
    return (1.0 / (float(theta) ** exps)).astype(np.float32)


def _build_coef(theta: float, d_k: int, pack: int, dp: int) -> jax.Array:
    """(pack+1, dp) f32: masked sign-baked inv_freq rows + parity row."""
    inv_freq = _inv_freq_np(theta, d_k)               # (d_k // 2,)
    freq_row = np.repeat(inv_freq, 2).astype(np.float32)   # (d_k,)
    freq_row[0::2] *= -1.0          # bake interleaved rotation sign into the angle
    coef = np.zeros((pack + 1, dp), np.float32)
    for p in range(pack):
        coef[p, p * d_k:(p + 1) * d_k] = freq_row
    coef[pack, 0::2] = 1.0          # parity row: 1.0 on even lanes
    return jnp.asarray(coef)


# ---------------------------------------------------------------------------
# Wrapper
# ---------------------------------------------------------------------------

_FUSED_OK = True   # flipped off if in-kernel sin/cos fails to lower on this toolchain


def rope_forward(x, input_token_positions, theta: float, *, row_tile: int = 2048):
    """x: (..., d_k); input_token_positions: x.shape[:-1] (int) -> same as x."""
    global _FUSED_OK
    orig_shape = x.shape
    d_k = x.shape[-1]
    assert d_k % 2 == 0, f"d_k should be even, but got {d_k}"
    assert tuple(input_token_positions.shape) == tuple(x.shape[:-1])

    n = math.prod(x.shape[:-1])
    x2 = x.reshape(n, d_k)
    pos_f = input_token_positions.reshape(n).astype(jnp.float32)   # exact < 2^24

    # ---- lane packing: make the kernel's last dim a multiple of 128 --------
    if d_k % 128 == 0:
        pack = 1
    else:
        pack = math.lcm(d_k, 128) // d_k
        if pack * d_k > 1024 or pack > 16 or n % pack != 0:
            pack = 1        # degrade to lane-sparse rather than jnp.pad a full copy
    dp = pack * d_k
    n_rows = n // pack

    xp = x2.reshape(n_rows, dp)               # contiguous reshape: no HBM copy
    posp = pos_f.reshape(n_rows, pack)

    # ---- row tiling ---------------------------------------------------------
    itemsize = x.dtype.itemsize
    sub = max(8, 32 // itemsize)              # sublane multiple: 8 f32 / 16 bf16 / 32 i8
    rup = lambda a, m: -(-a // m) * m
    tm = min(rup(row_tile, sub),
             rup(pl.cdiv(n_rows, 2), sub))    # >= 2 grid steps when possible (v7x megacore)
    if tm >= n_rows:
        tm = n_rows                           # one exact block for small inputs
    grid = (pl.cdiv(n_rows, tm),)             # partial last block masked by Pallas:
                                              # no jnp.pad, no output slice copies.
    row_spec = pl.BlockSpec((tm, dp), lambda i: (i, 0))

    cparams = pltpu.CompilerParams(
        dimension_semantics=("parallel",),
        vmem_limit_bytes=32 * 1024 * 1024,    # blocks ~1 MiB; safe on v5e/v6e/v7x
    )

    # ------------------------- fused (primary) path --------------------------
    if _FUSED_OK:
        try:
            coef = _build_coef(theta, d_k, pack, dp)
            cost = pl.CostEstimate(
                flops=(2 * pack + 8) * n_rows * dp,
                transcendentals=2 * n_rows * dp,
                bytes_accessed=2 * n_rows * dp * itemsize + n_rows * pack * 4,
            )
            out = pl.pallas_call(
                _rope_fused_kernel,
                out_shape=jax.ShapeDtypeStruct((n_rows, dp), x.dtype),
                grid=grid,
                in_specs=[pl.BlockSpec((tm, pack), lambda i: (i, 0)),
                          pl.BlockSpec((pack + 1, dp), lambda i: (0, 0)),
                          row_spec],
                out_specs=row_spec,
                compiler_params=cparams,
                cost_estimate=cost,
            )(posp, coef, xp)
            return out.reshape(orig_shape)
        except Exception:
            _FUSED_OK = False   # e.g. jnp.sin/cos not lowerable -> use fallback below

    # ------------------------- fallback path ---------------------------------
    # cos / sign-baked sin computed by XLA in the wrapper (extra HBM traffic),
    # rotation still done by the Pallas kernel with the same tiling.
    inv_freq = jnp.asarray(_inv_freq_np(theta, d_k))                    # (d_k//2,)
    sign = jnp.asarray(np.tile(np.array([-1.0, 1.0], np.float32), d_k // 2))
    ang = pos_f[:, None] * inv_freq[None, :]                            # (n, d_k//2)
    cos_g = jnp.repeat(jnp.cos(ang), 2, axis=-1).reshape(n_rows, dp)
    sin_g = (jnp.repeat(jnp.sin(ang), 2, axis=-1) * sign).reshape(n_rows, dp)
    cost = pl.CostEstimate(
        flops=8 * n_rows * dp,
        transcendentals=0,
        bytes_accessed=n_rows * dp * (2 * itemsize + 8),
    )
    out = pl.pallas_call(
        _rope_tables_kernel,
        out_shape=jax.ShapeDtypeStruct((n_rows, dp), x.dtype),
        grid=grid,
        in_specs=[row_spec, row_spec, row_spec],
        out_specs=row_spec,
        compiler_params=cparams,
        cost_estimate=cost,
    )(xp, cos_g, sin_g)
    return out.reshape(orig_shape)


# ---------------------------------------------------------------------------
# Reference (plain-JAX port of the torch module) for validation
# ---------------------------------------------------------------------------

def build_rope_cache(theta: float, d_k: int, max_seq_len: int):
    inv_freq = jnp.asarray(_inv_freq_np(theta, d_k))
    seq_idx = jnp.arange(max_seq_len, dtype=jnp.float32)
    m_theta = seq_idx[:, None] * inv_freq[None, :]                 # (L, d_k//2)
    return (jnp.repeat(jnp.cos(m_theta), 2, axis=-1),
            jnp.repeat(jnp.sin(m_theta), 2, axis=-1))


def rope_reference(x, positions, m_theta_cos, m_theta_sin):
    cos_g = m_theta_cos[positions]
    sin_g = m_theta_sin[positions]
    x_even = x[..., 0::2]
    x_odd = x[..., 1::2]
    x_alt = jnp.stack((-x_odd, x_even), axis=-1).reshape(x.shape)
    return (x.astype(jnp.float32) * cos_g
            + x_alt.astype(jnp.float32) * sin_g).astype(x.dtype)


if __name__ == "__main__":
    theta = 10000.0
    d_k = 32
    max_seq_len = 16
    B, S = 2, 8

    key = jax.random.PRNGKey(0)
    kx, kp = jax.random.split(key)
    x = jax.random.normal(kx, (B, S, d_k), dtype=jnp.float32)
    positions = jax.random.randint(kp, (B, S), 0, max_seq_len, dtype=jnp.int32)

    out = rope_forward(x, positions, theta)
    out = jax.block_until_ready(out)

    m_theta_cos, m_theta_sin = build_rope_cache(theta, d_k, max_seq_len)
    ref = rope_reference(x, positions, m_theta_cos, m_theta_sin)

    assert out.shape == x.shape and out.dtype == x.dtype
    # Only divergence vs. the reference is the in-kernel sin/cos polynomial
    # (few ULP) -- everything else (angles, FMAs, signs) is bit-matched f32.
    assert jnp.allclose(out, ref, atol=1e-4, rtol=1e-4), "mismatch vs reference"

    print("KERNEL_OK")
</pallas_src>

<mosaic_0001>
module attributes {stable_mosaic.version = 11 : i64} {
  func.func @_rope_fused_kernel(%arg0: i32, %arg1: memref<4x4xf32, #tpu.memory_space<vmem>>, %arg2: memref<5x128xf32, #tpu.memory_space<vmem>>, %arg3: memref<4x128xf32, #tpu.memory_space<vmem>>, %arg4: memref<4x128xf32, #tpu.memory_space<vmem>>) attributes {dimension_semantics = [#tpu.dimension_semantics<parallel>], iteration_bounds = array<i64: 1>, scalar_prefetch = 0 : i64, scratch_operands = 0 : i64, tpu.core_type = #tpu.core_type<tc>, window_params = [{transform_indices = @transform_0, window_bounds = array<i64: 4, 4>}, {pipeline_mode = #tpu.pipeline_mode<synchronous>, transform_indices = @transform_1, window_bounds = array<i64: 5, 128>}, {transform_indices = @transform_2, window_bounds = array<i64: 4, 128>}, {transform_indices = @transform_3, window_bounds = array<i64: 4, 128>}]} {
    %c0 = arith.constant 0 : index
    %c0_0 = arith.constant 0 : index
    %0 = vector.load %arg3[%c0, %c0_0] : memref<4x128xf32, #tpu.memory_space<vmem>>, vector<4x128xf32>
    %c0_1 = arith.constant 0 : index
    %c0_2 = arith.constant 0 : index
    %1 = vector.load %arg2[%c0_1, %c0_2] : memref<5x128xf32, #tpu.memory_space<vmem>>, vector<5x128xf32>
    %c0_3 = arith.constant 0 : index
    %c0_4 = arith.constant 0 : index
    %2 = vector.load %arg1[%c0_3, %c0_4] : memref<4x4xf32, #tpu.memory_space<vmem>>, vector<4x4xf32>
    %3 = vector.extract_strided_slice %2 {offsets = [0, 0], sizes = [4, 1], strides = [1, 1]} : vector<4x4xf32> to vector<4x1xf32>
    %4 = vector.extract_strided_slice %1 {offsets = [0, 0], sizes = [1, 128], strides = [1, 1]} : vector<5x128xf32> to vector<1x128xf32>
    %5 = vector.broadcast %3 : vector<4x1xf32> to vector<4x128xf32>
    %6 = vector.broadcast %4 : vector<1x128xf32> to vector<4x128xf32>
    %7 = arith.mulf %5, %6 : vector<4x128xf32>
    %8 = vector.extract_strided_slice %2 {offsets = [0, 1], sizes = [4, 1], strides = [1, 1]} : vector<4x4xf32> to vector<4x1xf32>
    %9 = vector.extract_strided_slice %1 {offsets = [1, 0], sizes = [1, 128], strides = [1, 1]} : vector<5x128xf32> to vector<1x128xf32>
    %10 = vector.broadcast %8 : vector<4x1xf32> to vector<4x128xf32>
    %11 = vector.broadcast %9 : vector<1x128xf32> to vector<4x128xf32>
    %12 = arith.mulf %10, %11 : vector<4x128xf32>
    %13 = arith.addf %7, %12 : vector<4x128xf32>
    %14 = vector.extract_strided_slice %2 {offsets = [0, 2], sizes = [4, 1], strides = [1, 1]} : vector<4x4xf32> to vector<4x1xf32>
    %15 = vector.extract_strided_slice %1 {offsets = [2, 0], sizes = [1, 128], strides = [1, 1]} : vector<5x128xf32> to vector<1x128xf32>
    %16 = vector.broadcast %14 : vector<4x1xf32> to vector<4x128xf32>
    %17 = vector.broadcast %15 : vector<1x128xf32> to vector<4x128xf32>
    %18 = arith.mulf %16, %17 : vector<4x128xf32>
    %19 = arith.addf %13, %18 : vector<4x128xf32>
    %20 = vector.extract_strided_slice %2 {offsets = [0, 3], sizes = [4, 1], strides = [1, 1]} : vector<4x4xf32> to vector<4x1xf32>
    %21 = vector.extract_strided_slice %1 {offsets = [3, 0], sizes = [1, 128], strides = [1, 1]} : vector<5x128xf32> to vector<1x128xf32>
    %22 = vector.broadcast %20 : vector<4x1xf32> to vector<4x128xf32>
    %23 = vector.broadcast %21 : vector<1x128xf32> to vector<4x128xf32>
    %24 = arith.mulf %22, %23 : vector<4x128xf32>
    %25 = arith.addf %19, %24 : vector<4x128xf32>
    %26 = math.cos %25 : vector<4x128xf32>
    %27 = math.sin %25 : vector<4x128xf32>
    %c1_i32 = arith.constant 1 : i32
    %28 = tpu.dynamic_rotate %0 by %c1_i32 dim 1 : vector<4x128xf32>, i32 -> vector<4x128xf32>
    %c127_i32 = arith.constant 127 : i32
    %29 = tpu.dynamic_rotate %0 by %c127_i32 dim 1 : vector<4x128xf32>, i32 -> vector<4x128xf32>
    %30 = vector.extract_strided_slice %1 {offsets = [4, 0], sizes = [1, 128], strides = [1, 1]} : vector<5x128xf32> to vector<1x128xf32>
    %31 = vector.broadcast %30 : vector<1x128xf32> to vector<4x128xf32>
    %32 = arith.mulf %27, %31 : vector<4x128xf32>
    %33 = arith.subf %27, %32 : vector<4x128xf32>
    %34 = arith.mulf %0, %26 : vector<4x128xf32>
    %35 = arith.mulf %29, %32 : vector<4x128xf32>
    %36 = arith.addf %34, %35 : vector<4x128xf32>
    %37 = arith.mulf %28, %33 : vector<4x128xf32>
    %38 = arith.addf %36, %37 : vector<4x128xf32>
    %c0_5 = arith.constant 0 : index
    %c0_6 = arith.constant 0 : index
    %39 = vector.load %arg4[%c0_5, %c0_6] : memref<4x128xf32, #tpu.memory_space<vmem>>, vector<4x128xf32>
    tpu.vector_store %arg4[%c0_5, %c0_6], %38 {strides = array<i32>} : memref<4x128xf32, #tpu.memory_space<vmem>>, vector<4x128xf32>,
    return
  }
  func.func @transform_0(%arg0: i32) -> (i32, i32) {
    %c0_i32 = arith.constant 0 : i32
    %c0_i32_0 = arith.constant 0 : i32
    return %arg0, %c0_i32 : i32, i32
  }
  func.func @transform_1(%arg0: i32) -> (i32, i32) {
    %c0_i32 = arith.constant 0 : i32
    %c0_i32_0 = arith.constant 0 : i32
    %c0_i32_1 = arith.constant 0 : i32
    return %c0_i32, %c0_i32_0 : i32, i32
  }
  func.func @transform_2(%arg0: i32) -> (i32, i32) {
    %c0_i32 = arith.constant 0 : i32
    %c0_i32_0 = arith.constant 0 : i32
    return %arg0, %c0_i32 : i32, i32
  }
  func.func @transform_3(%arg0: i32) -> (i32, i32) {
    %c0_i32 = arith.constant 0 : i32
    %c0_i32_0 = arith.constant 0 : i32
    return %arg0, %c0_i32 : i32, i32
  }
}

module attributes {stable_mosaic.version = 11 : i64} {
  func.func @_rope_tables_kernel(%arg0: i32, %arg1: memref<4x128xf32, #tpu.memory_space<vmem>>, %arg2: memref<4x128xf32, #tpu.memory_space<vmem>>, %arg3: memref<4x128xf32, #tpu.memory_space<vmem>>, %arg4: memref<4x128xf32, #tpu.memory_space<vmem>>) attributes {dimension_semantics = [#tpu.dimension_semantics<parallel>], iteration_bounds = array<i64: 1>, scalar_prefetch = 0 : i64, scratch_operands = 0 : i64, tpu.core_type = #tpu.core_type<tc>, window_params = [{transform_indices = @transform_0, window_bounds = array<i64: 4, 128>}, {transform_indices = @transform_1, window_bounds = array<i64: 4, 128>}, {transform_indices = @transform_2, window_bounds = array<i64: 4, 128>}, {transform_indices = @transform_3, window_bounds = array<i64: 4, 128>}]} {
    %c0 = arith.constant 0 : index
    %c0_0 = arith.constant 0 : index
    %0 = vector.load %arg1[%c0, %c0_0] : memref<4x128xf32, #tpu.memory_space<vmem>>, vector<4x128xf32>
    %c0_1 = arith.constant 0 : index
    %c0_2 = arith.constant 0 : index
    %1 = vector.load %arg2[%c0_1, %c0_2] : memref<4x128xf32, #tpu.memory_space<vmem>>, vector<4x128xf32>
    %c0_3 = arith.constant 0 : index
    %c0_4 = arith.constant 0 : index
    %2 = vector.load %arg3[%c0_3, %c0_4] : memref<4x128xf32, #tpu.memory_space<vmem>>, vector<4x128xf32>
    %c1_i32 = arith.constant 1 : i32
    %3 = tpu.dynamic_rotate %0 by %c1_i32 dim 1 : vector<4x128xf32>, i32 -> vector<4x128xf32>
    %c127_i32 = arith.constant 127 : i32
    %4 = tpu.dynamic_rotate %0 by %c127_i32 dim 1 : vector<4x128xf32>, i32 -> vector<4x128xf32>
    %5 = tpu.iota {dimensions = array<i32: 1>} : vector<4x128xi32>
    %c1_i32_5 = arith.constant 1 : i32
    %6 = vector.broadcast %c1_i32_5 : i32 to vector<4x128xi32>
    %7 = arith.andi %5, %6 : vector<4x128xi32>
    %c0_i32 = arith.constant 0 : i32
    %8 = vector.broadcast %c0_i32 : i32 to vector<4x128xi32>
    %9 = arith.cmpi eq, %7, %8 : vector<4x128xi32>
    %10 = arith.select %9, %4, %3 : vector<4x128xi1>, vector<4x128xf32>
    %11 = arith.mulf %0, %1 : vector<4x128xf32>
    %12 = arith.mulf %10, %2 : vector<4x128xf32>
    %13 = arith.addf %11, %12 : vector<4x128xf32>
    %c0_6 = arith.constant 0 : index
    %c0_7 = arith.constant 0 : index
    %14 = vector.load %arg4[%c0_6, %c0_7] : memref<4x128xf32, #tpu.memory_space<vmem>>, vector<4x128xf32>
    tpu.vector_store %arg4[%c0_6, %c0_7], %13 {strides = array<i32>} : memref<4x128xf32, #tpu.memory_space<vmem>>, vector<4x128xf32>,
    return
  }
  func.func @transform_0(%arg0: i32) -> (i32, i32) {
    %c0_i32 = arith.constant 0 : i32
    %c0_i32_0 = arith.constant 0 : i32
    return %arg0, %c0_i32 : i32, i32
  }
  func.func @transform_1(%arg0: i32) -> (i32, i32) {
    %c0_i32 = arith.constant 0 : i32
    %c0_i32_0 = arith.constant 0 : i32
    return %arg0, %c0_i32 : i32, i32
  }
  func.func @transform_2(%arg0: i32) -> (i32, i32) {
    %c0_i32 = arith.constant 0 : i32
    %c0_i32_0 = arith.constant 0 : i32
    return %arg0, %c0_i32 : i32, i32
  }
  func.func @transform_3(%arg0: i32) -> (i32, i32) {
    %c0_i32 = arith.constant 0 : i32
    %c0_i32_0 = arith.constant 0 : i32
    return %arg0, %c0_i32 : i32, i32
  }
}

</mosaic_0001>

<llo_original>
// kernel: tpu_custom_call.1
$region0: #{tpu_custom_call.1}
  #allocation0 [shape = 'u32[]', space=smem, size = 0x4, offset = 0x4, fixed_abs, tag = 'smem constant byte address 0x4 - core index']
  #allocation1 [shape = 'u32[72,128]{1,0:T(1,128)}', space=vmem, size = 0x9000, scoped, tag = 'internal scratch']
  %s0 = inlined_call_operand.hbm [shape: f32[4,4], index: 0, kind: input, shape index: {}]
  %s1 = inlined_call_operand.hbm [shape: f32[5,128], index: 1, kind: input, shape index: {}]
  %s2 = inlined_call_operand.hbm [shape: f32[4,128], index: 2, kind: input, shape index: {}]
  %s3 = inlined_call_operand.hbm [shape: f32[4,128], index: 3, kind: output, shape index: {}]
  %s4 = sld [smem:[#allocation0]]
  $region34: #{tpu_custom_call.1} parent=0
    _
  %s6 = ssub.s32 1, %s4
  %s7 = scalar_select 0, %s6, %s4
  $region1: #{tpu_custom_call.1} parent=0
    #allocation2 [shape = 'u8[2048]{0}', space=vmem, size = 0x800, scoped, tag = 'input window, operand 0, single buffered']
    #allocation3 [shape = 's32[1]{0}', space=sflag, size = 0x4, scoped, tag = 'scoped memory for tpu_custom_call.1']
    #allocation4 [shape = 's32[1]{0}', space=sflag, size = 0x4, scoped, tag = 'scoped memory for tpu_custom_call.1']
    #allocation5 [shape = 'u8[4096]{0}', space=vmem, size = 0x1000, scoped, tag = 'input window, operand 1, single buffered']
    #allocation6 [shape = 's32[1]{0}', space=sflag, size = 0x4, scoped, tag = 'scoped memory for tpu_custom_call.1']
    #allocation7 [shape = 'u8[2048]{0}', space=vmem, size = 0x800, scoped, tag = 'input window, operand 2, single buffered']
    #allocation8 [shape = 'u8[2048]{0}', space=vmem, size = 0x800, scoped, tag = 'output window, operand 0, single buffered']
    %8 = vsyncpa [#allocation3], 0
    %9 = vsyncpa [#allocation6], 0
    %10 = vsyncpa [#allocation4], 0
    // Predicated region
    $region2: #{tpu_custom_call.1} parent=1 // pred_check
      _
    $region3: #{tpu_custom_call.1} parent=1 // pred_check_branch
      %12 = sbr.rel (0) target = $region5
    $region4: #{tpu_custom_call.1} parent=1 // pred_region
      %14 = vsyncadd [#allocation3], 0
      %s16 = sshll.u32 %s0, 4
      %s17 = int_to_ptr.hbm [resolvable:$true] %s16
      %s18 = sshll.u32 [#allocation2], 4
      %s19 = int_to_ptr.vmem [resolvable:$true] %s18
      %21 = dma.hbm_to_vmem [thread:$0]  %s17, 64, %s19, [#allocation3]
    $region5: #{tpu_custom_call.1} parent=1 // pred_fallthru
      _
    // Predicated region
    $region6: #{tpu_custom_call.1} parent=1 // pred_check
      _
    $region7: #{tpu_custom_call.1} parent=1 // pred_check_branch
      %23 = sbr.rel (0) target = $region9
    $region8: #{tpu_custom_call.1} parent=1 // pred_region
      %25 = vsyncadd [#allocation6], 0
      %s27 = sshll.u32 %s1, 4
      %s28 = int_to_ptr.hbm [resolvable:$true] %s27
      %s29 = sshll.u32 [#allocation5], 4
      %s30 = int_to_ptr.vmem [resolvable:$true] %s29
      %32 = dma.hbm_to_vmem [thread:$0]  %s28, 128, %s30, [#allocation6]
    $region9: #{tpu_custom_call.1} parent=1 // pred_fallthru
      _
    // Predicated region
    $region10: #{tpu_custom_call.1} parent=1 // pred_check
      _
    $region11: #{tpu_custom_call.1} parent=1 // pred_check_branch
      %34 = sbr.rel (0) target = $region13
    $region12: #{tpu_custom_call.1} parent=1 // pred_region
      %36 = vsyncadd [#allocation6], 0
      %s38 = sshll.u32 %s2, 4
      %s39 = int_to_ptr.hbm [resolvable:$true] %s38
      %s40 = sshll.u32 [#allocation7], 4
      %s41 = int_to_ptr.vmem [resolvable:$true] %s40
      %43 = dma.hbm_to_vmem [thread:$0]  %s39, 64, %s41, [#allocation6]
    $region13: #{tpu_custom_call.1} parent=1 // pred_fallthru
      _
    // Predicated region
    $region14: #{tpu_custom_call.1} parent=1 // pred_check
      _
    $region15: #{tpu_custom_call.1} parent=1 // pred_check_branch
      %45 = sbr.rel (0) target = $region17
    $region16: #{tpu_custom_call.1} parent=1 // pred_region
      %47 = dma.done [#allocation3], 64
    $region17: #{tpu_custom_call.1} parent=1 // pred_fallthru
      _
    // Predicated region
    $region18: #{tpu_custom_call.1} parent=1 // pred_check
      _
    $region19: #{tpu_custom_call.1} parent=1 // pred_check_branch
      %49 = sbr.rel (0) target = $region21
    $region20: #{tpu_custom_call.1} parent=1 // pred_region
      %51 = dma.done [#allocation6], 128
    $region21: #{tpu_custom_call.1} parent=1 // pred_fallthru
      _
    // Predicated region
    $region22: #{tpu_custom_call.1} parent=1 // pred_check
      _
    $region23: #{tpu_custom_call.1} parent=1 // pred_check_branch
      %53 = sbr.rel (0) target = $region25
    $region24: #{tpu_custom_call.1} parent=1 // pred_region
      %55 = dma.done [#allocation6], 64
    $region25: #{tpu_custom_call.1} parent=1 // pred_fallthru
      _
    %v56 = vld [vmem:[#allocation7] sm:$0xf]
    %v57 = vld [vmem:[#allocation5] sm:$0x1f]
    %v58 = vld [vmem:[#allocation2] sm:$0xf]
    %60 = vset.pattern.permute.xlu0 0
    %61 = vperm.xlu0 %60, %v58
    %v62 = vpop.permute.xlu0 %61
    %v64 = vperm.slane %v57, 0
    %v65 = vmul.f32 %v62, %v64
    %66 = vset.pattern.permute.xlu0 1
    %67 = vperm.xlu0 %66, %v58
    %v68 = vpop.permute.xlu0 %67
    %v70 = vperm.slane %v57, 1
    %v71 = vmul.f32 %v68, %v70
    %v72 = vadd.f32 %v65, %v71
    %73 = vset.pattern.permute.xlu0 2
    %74 = vperm.xlu0 %73, %v58
    %v75 = vpop.permute.xlu0 %74
    %v77 = vperm.slane %v57, 2
    %v78 = vmul.f32 %v75, %v77
    %v79 = vadd.f32 %v72, %v78
    %80 = vset.pattern.permute.xlu0 3
    %81 = vperm.xlu0 %80, %v58
    %v82 = vpop.permute.xlu0 %81
    %v84 = vperm.slane %v57, 3
    %v85 = vmul.f32 %v82, %v84
    %v86 = vadd.f32 %v79, %v85
    %v87 = vand.u32 2147483647, %v86
    %vm88 = vcmp.le.f32.partialorder %v87, 0.7853982
    %vm89 = vcmp.lt.s32.totalorder %v86, 0
    %v90 = vand.u32 %v86, 2139095040
    %v91 = vshrl.u32 %v90, 23
    %v92 = vsub.s32 %v91, 127
    %v93 = vand.u32 2147483647, %v86
    %v94 = vand.u32 %v93, 8388607
    %v95 = vor.u32 %v94, 8388608
    %v96 = vsub.s32 0, %v95
    %v97 = vadd.s32 %v92, 1
    %vm98 = vcmp.gt.s32.totalorder %v97, 0
    %v99 = vsel %vm98, %v97, 0
    %v100 = vshrl.u32 %v99, 5
    %v101 = vand.u32 %v99, 31
    %v102 = vsub.s32 32, %v101
    %v103 = vshrl.u32 683565275, %v102
    %v104 = vshll.u32 683565275, %v101
    %v105 = vshrl.u32 2475754826, %v102
    %v106 = vor.u32 %v104, %v105
    %v107 = vshll.u32 2475754826, %v101
    %v108 = vshrl.u32 2131351028, %v102
    %v109 = vor.u32 %v107, %v108
    %v110 = vshll.u32 2131351028, %v101
    %v111 = vshrl.u32 2102212464, %v102
    %v112 = vor.u32 %v110, %v111
    %v113 = vshll.u32 2102212464, %v101
    %v114 = vshrl.u32 920167782, %v102
    %v115 = vor.u32 %v113, %v114
    %v116 = vshll.u32 920167782, %v101
    %v117 = vshrl.u32 1326507024, %v102
    %v118 = vor.u32 %v116, %v117
    %vm119 = vcmp.lt.s32.totalorder %v100, 1
    %vm120 = vcmp.lt.s32.totalorder %v100, 2
    %vm121 = vcmp.lt.s32.totalorder %v100, 3
    %vm122 = vcmp.lt.s32.totalorder %v100, 4
    %v123 = vsel %vm119, %v103, %v106
    %v124 = vsel %vm122, %v112, 2102212464
    %v125 = vsel %vm121, %v109, %v124
    %v126 = vsel %vm120, %v123, %v125
    %v127 = vsel %vm119, %v106, %v109
    %v128 = vsel %vm122, %v115, 920167782
    %v129 = vsel %vm121, %v112, %v128
    %v130 = vsel %vm120, %v127, %v129
    %v131 = vsel %vm119, %v109, %v112
    %v132 = vsel %vm122, %v118, 1326507024
    %v133 = vsel %vm121, %v115, %v132
    %v134 = vsel %vm120, %v131, %v133
    %v135 = vshll.u32 %v95, 8
    %v136 = vand.u32 %v135, 65535
    %v137 = vshrl.u32 %v135, 16
    %v138 = vand.u32 %v134, 65535
    %v139 = vshrl.u32 %v134, 16
    %v140 = vmul.u32 %v136, %v138
    %v141 = vmul.u32 %v136, %v139
    %v142 = vmul.u32 %v137, %v138
    %v143 = vmul.u32 %v137, %v139
    %v144 = vshll.u32 %v141, 16
    %v145 = vshrl.u32 %v141, 16
    %v146 = vshll.u32 %v142, 16
    %v147 = vshrl.u32 %v142, 16
    %vm148 = vc.u32 %v140, %v144
    %v149 = vsel %vm148, 1, 0
    %v150 = vadd.s32 %v140, %v144
    %v151 = vadd.s32 %v143, %v149
    %vm152 = vc.u32 %v150, %v146
    %v153 = vsel %vm152, 1, 0
    %v154 = vadd.s32 %v150, %v146
    %v155 = vadd.s32 %v151, %v153
    %v156 = vadd.s32 %v155, %v145
    %v157 = vadd.s32 %v156, %v147
    %v158 = vand.u32 %v135, 65535
    %v159 = vshrl.u32 %v135, 16
    %v160 = vand.u32 %v130, 65535
    %v161 = vshrl.u32 %v130, 16
    %v162 = vmul.u32 %v158, %v160
    %v163 = vmul.u32 %v158, %v161
    %v164 = vmul.u32 %v159, %v160
    %v165 = vmul.u32 %v159, %v161
    %v166 = vshll.u32 %v163, 16
    %v167 = vshrl.u32 %v163, 16
    %v168 = vshll.u32 %v164, 16
    %v169 = vshrl.u32 %v164, 16
    %vm170 = vc.u32 %v162, %v166
    %v171 = vsel %vm170, 1, 0
    %v172 = vadd.s32 %v162, %v166
    %v173 = vadd.s32 %v165, %v171
    %vm174 = vc.u32 %v172, %v168
    %v175 = vsel %vm174, 1, 0
    %v176 = vadd.s32 %v172, %v168
    %v177 = vadd.s32 %v173, %v175
    %v178 = vadd.s32 %v177, %v167
    %v179 = vadd.s32 %v178, %v169
    %v180 = vmul.u32 %v135, %v126
    %v181 = vadd.s32 %v157, %v176
    %vm182 = vc.u32 %v157, %v176
    %v183 = vadd.s32 %v179, 1
    %v184 = vsel %vm182, %v183, %v179
    %v185 = vadd.s32 %v180, %v184
    %v186 = vadd.s32 %v185, 536870912
    %v187 = vshrl.u32 %v186, 30
    %v188 = vshll.u32 %v187, 30
    %v189 = vsub.s32 %v185, %v188
    %vm190 = vcmp.lt.s32.totalorder %v189, 0
    %v191 = vsub.s32 0, %v189
    %v192 = vsel %vm190, %v191, %v189
    %v193 = vclz %v192
    %v194 = vsub.s32 %v193, 2
    %vm195 = vcmp.gt.s32.totalorder 0, %v194
    %v196 = vsel %vm195, 0, %v194
    %v197 = vsub.s32 32, %v196
    %v198 = vshll.u32 %v189, %v196
    %v199 = vshrl.u32 %v181, %v197
    %v200 = vor.u32 %v198, %v199
    %v201 = vsub.s32 4294967266, %v196
    %v202 = vadd.s32 %v201, 127
    %v203 = vshll.u32 %v202, 23
    %v204 = vor.u32 4788187, %v203
    %v205 = vand.u32 2147483647, %v204
    %v207 = vcvt.s32.f32 %v200
    %v208 = vmul.f32 %v207, %v205
    %v209 = vxor.u32 %v208, 2147483648
    %v210 = vsel %vm89, %v209, %v208
    %v211 = vsub.s32 4, %v187
    %v212 = vsel %vm89, %v211, %v187
    %v213 = vsel %vm88, %v86, %v210
    %v214 = vsel %vm88, 0, %v212
    %v215 = vmul.f32 %v213, %v213
    %v216 = vmul.f32 %v215, -0.001358992
    %v217 = vadd.f32 %v216, 0.041655596
    %v218 = vmul.f32 %v215, %v217
    %v219 = vadd.f32 %v218, -0.4999988
    %v220 = vmul.f32 %v215, %v219
    %v221 = vadd.f32 1.0, %v220
    %v222 = vmul.f32 %v213, %v213
    %v223 = vmul.f32 %v222, -0.00019511016
    %v224 = vadd.f32 %v223, 0.008332121
    %v225 = vmul.f32 %v222, %v224
    %v226 = vadd.f32 %v225, -0.16666654
    %v227 = vmul.f32 %v222, %v226
    %v228 = vadd.f32 %v227, 1.0
    %v229 = vmul.f32 %v228, %v213
    %vm230 = vweird.f32 %v86
    %v231 = vand.u32 %v214, 3
    %vm232 = vcmp.lt.s32.totalorder %v231, 2
    %vm233 = vcmp.eq.s32.totalorder %v231, 0
    %v234 = vxor.u32 %v229, 2147483648
    %v235 = vsel %vm233, %v221, %v234
    %vm236 = vcmp.eq.s32.totalorder %v231, 2
    %v237 = vxor.u32 %v221, 2147483648
    %v238 = vsel %vm236, %v237, %v229
    %v239 = vsel %vm232, %v235, %v238
    %v240 = vsel %vm230, nan, %v239
    %v241 = vand.u32 2147483647, %v86
    %vm242 = vcmp.le.f32.partialorder %v241, 0.7853982
    %vm243 = vcmp.lt.s32.totalorder %v86, 0
    %v244 = vand.u32 %v86, 2139095040
    %v245 = vshrl.u32 %v244, 23
    %v246 = vsub.s32 %v245, 127
    %v247 = vand.u32 2147483647, %v86
    %v248 = vand.u32 %v247, 8388607
    %v249 = vor.u32 %v248, 8388608
    %v250 = vsub.s32 0, %v249
    %v251 = vadd.s32 %v246, 1
    %vm252 = vcmp.gt.s32.totalorder %v251, 0
    %v253 = vsel %vm252, %v251, 0
    %v254 = vshrl.u32 %v253, 5
    %v255 = vand.u32 %v253, 31
    %v256 = vsub.s32 32, %v255
    %v257 = vshrl.u32 683565275, %v256
    %v258 = vshll.u32 683565275, %v255
    %v259 = vshrl.u32 2475754826, %v256
    %v260 = vor.u32 %v258, %v259
    %v261 = vshll.u32 2475754826, %v255
    %v262 = vshrl.u32 2131351028, %v256
    %v263 = vor.u32 %v261, %v262
    %v264 = vshll.u32 2131351028, %v255
    %v265 = vshrl.u32 2102212464, %v256
    %v266 = vor.u32 %v264, %v265
    %v267 = vshll.u32 2102212464, %v255
    %v268 = vshrl.u32 920167782, %v256
    %v269 = vor.u32 %v267, %v268
    %v270 = vshll.u32 920167782, %v255
    %v271 = vshrl.u32 1326507024, %v256
    %v272 = vor.u32 %v270, %v271
    %vm273 = vcmp.lt.s32.totalorder %v254, 1
    %vm274 = vcmp.lt.s32.totalorder %v254, 2
    %vm275 = vcmp.lt.s32.totalorder %v254, 3
    %vm276 = vcmp.lt.s32.totalorder %v254, 4
    %v277 = vsel %vm273, %v257, %v260
    %v278 = vsel %vm276, %v266, 2102212464
    %v279 = vsel %vm275, %v263, %v278
    %v280 = vsel %vm274, %v277, %v279
    %v281 = vsel %vm273, %v260, %v263
    %v282 = vsel %vm276, %v269, 920167782
    %v283 = vsel %vm275, %v266, %v282
    %v284 = vsel %vm274, %v281, %v283
    %v285 = vsel %vm273, %v263, %v266
    %v286 = vsel %vm276, %v272, 1326507024
    %v287 = vsel %vm275, %v269, %v286
    %v288 = vsel %vm274, %v285, %v287
    %v289 = vshll.u32 %v249, 8
    %v290 = vand.u32 %v289, 65535
    %v291 = vshrl.u32 %v289, 16
    %v292 = vand.u32 %v288, 65535
    %v293 = vshrl.u32 %v288, 16
    %v294 = vmul.u32 %v290, %v292
    %v295 = vmul.u32 %v290, %v293
    %v296 = vmul.u32 %v291, %v292
    %v297 = vmul.u32 %v291, %v293
    %v298 = vshll.u32 %v295, 16
    %v299 = vshrl.u32 %v295, 16
    %v300 = vshll.u32 %v296, 16
    %v301 = vshrl.u32 %v296, 16
    %vm302 = vc.u32 %v294, %v298
    %v303 = vsel %vm302, 1, 0
    %v304 = vadd.s32 %v294, %v298
    %v305 = vadd.s32 %v297, %v303
    %vm306 = vc.u32 %v304, %v300
    %v307 = vsel %vm306, 1, 0
    %v308 = vadd.s32 %v304, %v300
    %v309 = vadd.s32 %v305, %v307
    %v310 = vadd.s32 %v309, %v299
    %v311 = vadd.s32 %v310, %v301
    %v312 = vand.u32 %v289, 65535
    %v313 = vshrl.u32 %v289, 16
    %v314 = vand.u32 %v284, 65535
    %v315 = vshrl.u32 %v284, 16
    %v316 = vmul.u32 %v312, %v314
    %v317 = vmul.u32 %v312, %v315
    %v318 = vmul.u32 %v313, %v314
    %v319 = vmul.u32 %v313, %v315
    %v320 = vshll.u32 %v317, 16
    %v321 = vshrl.u32 %v317, 16
    %v322 = vshll.u32 %v318, 16
    %v323 = vshrl.u32 %v318, 16
    %vm324 = vc.u32 %v316, %v320
    %v325 = vsel %vm324, 1, 0
    %v326 = vadd.s32 %v316, %v320
    %v327 = vadd.s32 %v319, %v325
    %vm328 = vc.u32 %v326, %v322
    %v329 = vsel %vm328, 1, 0
    %v330 = vadd.s32 %v326, %v322
    %v331 = vadd.s32 %v327, %v329
    %v332 = vadd.s32 %v331, %v321
    %v333 = vadd.s32 %v332, %v323
    %v334 = vmul.u32 %v289, %v280
    %v335 = vadd.s32 %v311, %v330
    %vm336 = vc.u32 %v311, %v330
    %v337 = vadd.s32 %v333, 1
    %v338 = vsel %vm336, %v337, %v333
    %v339 = vadd.s32 %v334, %v338
    %v340 = vadd.s32 %v339, 536870912
    %v341 = vshrl.u32 %v340, 30
    %v342 = vshll.u32 %v341, 30
    %v343 = vsub.s32 %v339, %v342
    %vm344 = vcmp.lt.s32.totalorder %v343, 0
    %v345 = vsub.s32 0, %v343
    %v346 = vsel %vm344, %v345, %v343
    %v347 = vclz %v346
    %v348 = vsub.s32 %v347, 2
    %vm349 = vcmp.gt.s32.totalorder 0, %v348
    %v350 = vsel %vm349, 0, %v348
    %v351 = vsub.s32 32, %v350
    %v352 = vshll.u32 %v343, %v350
    %v353 = vshrl.u32 %v335, %v351
    %v354 = vor.u32 %v352, %v353
    %v355 = vsub.s32 4294967266, %v350
    %v356 = vadd.s32 %v355, 127
    %v357 = vshll.u32 %v356, 23
    %v358 = vor.u32 4788187, %v357
    %v359 = vand.u32 2147483647, %v358
    %v361 = vcvt.s32.f32 %v354
    %v362 = vmul.f32 %v361, %v359
    %v363 = vxor.u32 %v362, 2147483648
    %v364 = vsel %vm243, %v363, %v362
    %v365 = vsub.s32 4, %v341
    %v366 = vsel %vm243, %v365, %v341
    %v367 = vsel %vm242, %v86, %v364
    %v368 = vsel %vm242, 0, %v366
    %v369 = vmul.f32 %v367, %v367
    %v370 = vmul.f32 %v369, -0.001358992
    %v371 = vadd.f32 %v370, 0.041655596
    %v372 = vmul.f32 %v369, %v371
    %v373 = vadd.f32 %v372, -0.4999988
    %v374 = vmul.f32 %v369, %v373
    %v375 = vadd.f32 1.0, %v374
    %v376 = vmul.f32 %v367, %v367
    %v377 = vmul.f32 %v376, -0.00019511016
    %v378 = vadd.f32 %v377, 0.008332121
    %v379 = vmul.f32 %v376, %v378
    %v380 = vadd.f32 %v379, -0.16666654
    %v381 = vmul.f32 %v376, %v380
    %v382 = vadd.f32 %v381, 1.0
    %v383 = vmul.f32 %v382, %v367
    %vm384 = vweird.f32 %v86
    %v385 = vadd.s32 %v368, 3
    %v386 = vand.u32 %v385, 3
    %vm387 = vcmp.lt.s32.totalorder %v386, 2
    %vm388 = vcmp.eq.s32.totalorder %v386, 0
    %v389 = vxor.u32 %v383, 2147483648
    %v390 = vsel %vm388, %v375, %v389
    %vm391 = vcmp.eq.s32.totalorder %v386, 2
    %v392 = vxor.u32 %v375, 2147483648
    %v393 = vsel %vm391, %v392, %v383
    %v394 = vsel %vm387, %v390, %v393
    %v395 = vsel %vm384, nan, %v394
    %396 = vrot.lane.b32.xlu0 %v56, 1
    %v397 = vpop.permute.xlu0 %396
    %398 = vrot.lane.b32.xlu0 %v56, 127
    %v399 = vpop.permute.xlu0 %398
    %v400 = vperm.slane %v57, 4
    %v401 = vmul.f32 %v395, %v400
    %v402 = vsub.f32 %v395, %v401
    %v403 = vmul.f32 %v56, %v240
    %v404 = vmul.f32 %v399, %v401
    %v405 = vadd.f32 %v403, %v404
    %v406 = vmul.f32 %v397, %v402
    %v407 = vadd.f32 %v405, %v406
    %408 = vst [vmem:[#allocation8] sm:$0xf] %v407
    // Predicated region
    $region26: #{tpu_custom_call.1} parent=1 // pred_check
      _
    $region27: #{tpu_custom_call.1} parent=1 // pred_check_branch
      %410 = sbr.rel (0) target = $region29
    $region28: #{tpu_custom_call.1} parent=1 // pred_region
      %412 = vsyncadd [#allocation4], 0
      %s414 = sshll.u32 [#allocation8], 4
      %s415 = int_to_ptr.vmem [resolvable:$true] %s414
      %s416 = sshll.u32 %s3, 4
      %s417 = int_to_ptr.hbm [resolvable:$true] %s416
      %419 = dma.vmem_to_hbm [thread:$0]  %s415, 64, %s417, [#allocation4]
    $region29: #{tpu_custom_call.1} parent=1 // pred_fallthru
      _
    // Predicated region
    $region30: #{tpu_custom_call.1} parent=1 // pred_check
      _
    $region31: #{tpu_custom_call.1} parent=1 // pred_check_branch
      %421 = sbr.rel (0) target = $region33
    $region32: #{tpu_custom_call.1} parent=1 // pred_region
      %423 = dma.done [#allocation4], 64
    $region33: #{tpu_custom_call.1} parent=1 // pred_fallthru
      _
    %424 = vsyncpa [#allocation3], 1
    %425 = vsyncpa [#allocation6], 1
    %426 = vsyncpa [#allocation4], 1

// kernel: tpu_custom_call.1
$region0: #{tpu_custom_call.1}
  #allocation0 [shape = 'u32[]', space=smem, size = 0x4, offset = 0x4, fixed_abs, tag = 'smem constant byte address 0x4 - core index']
  #allocation1 [shape = 'u32[72,128]{1,0:T(1,128)}', space=vmem, size = 0x9000, scoped, tag = 'internal scratch']
  %s0 = inlined_call_operand.hbm [shape: f32[4,128], index: 0, kind: input, shape index: {}]
  %s1 = inlined_call_operand.hbm [shape: f32[4,128], index: 1, kind: input, shape index: {}]
  %s2 = inlined_call_operand.hbm [shape: f32[4,128], index: 2, kind: input, shape index: {}]
  %s3 = inlined_call_operand.hbm [shape: f32[4,128], index: 3, kind: output, shape index: {}]
  %s4 = sld [smem:[#allocation0]]
  $region34: #{tpu_custom_call.1} parent=0
    _
  %s6 = ssub.s32 1, %s4
  %s7 = scalar_select 0, %s6, %s4
  $region1: #{tpu_custom_call.1} parent=0
    #allocation2 [shape = 'u8[2048]{0}', space=vmem, size = 0x800, scoped, tag = 'input window, operand 0, single buffered']
    #allocation3 [shape = 's32[1]{0}', space=sflag, size = 0x4, scoped, tag = 'scoped memory for tpu_custom_call.1']
    #allocation4 [shape = 's32[1]{0}', space=sflag, size = 0x4, scoped, tag = 'scoped memory for tpu_custom_call.1']
    #allocation5 [shape = 'u8[2048]{0}', space=vmem, size = 0x800, scoped, tag = 'input window, operand 1, single buffered']
    #allocation6 [shape = 's32[1]{0}', space=sflag, size = 0x4, scoped, tag = 'scoped memory for tpu_custom_call.1']
    #allocation7 [shape = 'u8[2048]{0}', space=vmem, size = 0x800, scoped, tag = 'input window, operand 2, single buffered']
    #allocation8 [shape = 'u8[2048]{0}', space=vmem, size = 0x800, scoped, tag = 'output window, operand 0, single buffered']
    %8 = vsyncpa [#allocation3], 0
    %9 = vsyncpa [#allocation6], 0
    %10 = vsyncpa [#allocation4], 0
    // Predicated region
    $region2: #{tpu_custom_call.1} parent=1 // pred_check
      _
    $region3: #{tpu_custom_call.1} parent=1 // pred_check_branch
      %12 = sbr.rel (0) target = $region5
    $region4: #{tpu_custom_call.1} parent=1 // pred_region
      %14 = vsyncadd [#allocation3], 0
      %s16 = sshll.u32 %s0, 4
      %s17 = int_to_ptr.hbm [resolvable:$true] %s16
      %s18 = sshll.u32 [#allocation2], 4
      %s19 = int_to_ptr.vmem [resolvable:$true] %s18
      %21 = dma.hbm_to_vmem [thread:$0]  %s17, 64, %s19, [#allocation3]
    $region5: #{tpu_custom_call.1} parent=1 // pred_fallthru
      _
    // Predicated region
    $region6: #{tpu_custom_call.1} parent=1 // pred_check
      _
    $region7: #{tpu_custom_call.1} parent=1 // pred_check_branch
      %23 = sbr.rel (0) target = $region9
    $region8: #{tpu_custom_call.1} parent=1 // pred_region
      %25 = vsyncadd [#allocation6], 0
      %s27 = sshll.u32 %s1, 4
      %s28 = int_to_ptr.hbm [resolvable:$true] %s27
      %s29 = sshll.u32 [#allocation5], 4
      %s30 = int_to_ptr.vmem [resolvable:$true] %s29
      %32 = dma.hbm_to_vmem [thread:$0]  %s28, 64, %s30, [#allocation6]
    $region9: #{tpu_custom_call.1} parent=1 // pred_fallthru
      _
    // Predicated region
    $region10: #{tpu_custom_call.1} parent=1 // pred_check
      _
    $region11: #{tpu_custom_call.1} parent=1 // pred_check_branch
      %34 = sbr.rel (0) target = $region13
    $region12: #{tpu_custom_call.1} parent=1 // pred_region
      %36 = vsyncadd [#allocation6], 0
      %s38 = sshll.u32 %s2, 4
      %s39 = int_to_ptr.hbm [resolvable:$true] %s38
      %s40 = sshll.u32 [#allocation7], 4
      %s41 = int_to_ptr.vmem [resolvable:$true] %s40
      %43 = dma.hbm_to_vmem [thread:$0]  %s39, 64, %s41, [#allocation6]
    $region13: #{tpu_custom_call.1} parent=1 // pred_fallthru
      _
    // Predicated region
    $region14: #{tpu_custom_call.1} parent=1 // pred_check
      _
    $region15: #{tpu_custom_call.1} parent=1 // pred_check_branch
      %45 = sbr.rel (0) target = $region17
    $region16: #{tpu_custom_call.1} parent=1 // pred_region
      %47 = dma.done [#allocation3], 64
    $region17: #{tpu_custom_call.1} parent=1 // pred_fallthru
      _
    // Predicated region
    $region18: #{tpu_custom_call.1} parent=1 // pred_check
      _
    $region19: #{tpu_custom_call.1} parent=1 // pred_check_branch
      %49 = sbr.rel (0) target = $region21
    $region20: #{tpu_custom_call.1} parent=1 // pred_region
      %51 = dma.done [#allocation6], 64
    $region21: #{tpu_custom_call.1} parent=1 // pred_fallthru
      _
    // Predicated region
    $region22: #{tpu_custom_call.1} parent=1 // pred_check
      _
    $region23: #{tpu_custom_call.1} parent=1 // pred_check_branch
      %53 = sbr.rel (0) target = $region25
    $region24: #{tpu_custom_call.1} parent=1 // pred_region
      %55 = dma.done [#allocation6], 64
    $region25: #{tpu_custom_call.1} parent=1 // pred_fallthru
      _
    %v56 = vld [vmem:[#allocation2] sm:$0xf]
    %v57 = vld [vmem:[#allocation5] sm:$0xf]
    %v58 = vld [vmem:[#allocation7] sm:$0xf]
    %59 = vrot.lane.b32.xlu0 %v56, 1
    %v60 = vpop.permute.xlu0 %59
    %61 = vrot.lane.b32.xlu0 %v56, 127
    %v62 = vpop.permute.xlu0 %61
    %v63 = vlaneseq
    %v64 = vand.u32 %v63, 127
    %v65 = vand.u32 %v64, 1
    %vm66 = vcmp.eq.s32.totalorder %v65, 0
    %v67 = vsel %vm66, %v62, %v60
    %v68 = vmul.f32 %v56, %v57
    %v69 = vmul.f32 %v67, %v58
    %v70 = vadd.f32 %v68, %v69
    %71 = vst [vmem:[#allocation8] sm:$0xf] %v70
    // Predicated region
    $region26: #{tpu_custom_call.1} parent=1 // pred_check
      _
    $region27: #{tpu_custom_call.1} parent=1 // pred_check_branch
      %73 = sbr.rel (0) target = $region29
    $region28: #{tpu_custom_call.1} parent=1 // pred_region
      %75 = vsyncadd [#allocation4], 0
      %s77 = sshll.u32 [#allocation8], 4
      %s78 = int_to_ptr.vmem [resolvable:$true] %s77
      %s79 = sshll.u32 %s3, 4
      %s80 = int_to_ptr.hbm [resolvable:$true] %s79
      %82 = dma.vmem_to_hbm [thread:$0]  %s78, 64, %s80, [#allocation4]
    $region29: #{tpu_custom_call.1} parent=1 // pred_fallthru
      _
    // Predicated region
    $region30: #{tpu_custom_call.1} parent=1 // pred_check
      _
    $region31: #{tpu_custom_call.1} parent=1 // pred_check_branch
      %84 = sbr.rel (0) target = $region33
    $region32: #{tpu_custom_call.1} parent=1 // pred_region
      %86 = dma.done [#allocation4], 64
    $region33: #{tpu_custom_call.1} parent=1 // pred_fallthru
      _
    %87 = vsyncpa [#allocation3], 1
    %88 = vsyncpa [#allocation6], 1
    %89 = vsyncpa [#allocation4], 1

</llo_original>
